<compile_context>
chip_gen: v7x
topology: tpu7x:2x2x1
jax: 0.10.0
libtpu: 0.0.40
codegen_flags: <defaults>
</compile_context>

<pallas_src>
import functools

import jax
import jax.numpy as jnp
from jax.experimental import pallas as pl
from jax.experimental.pallas import tpu as pltpu


def _round_up(x, m):
    return ((x + m - 1) // m) * m


def _gcn_kernel(adj_ref, x_ref, w1_ref, b1_ref, abar_ref, w2r_ref, bfused_ref, out_ref):
    """One grid step processes a block of TB graphs.

    adj_ref    : (TB, Np, Np)   bf16  per-graph normalized adjacency A_hat
    x_ref      : (TB*Np, Fp)    bf16  node features, graph-major rows
    w1_ref     : (Fp, Hp)       bf16  conv1 weight (grid-invariant)
    b1_ref     : (1, Hp)        f32   conv1 bias
    abar_ref   : (TB, TB*Np)    f32   block-diagonal mean-readout rows (colsum(A_hat)/N)
    w2r_ref    : (Hp, Op)       f32   W2 @ Wr^T (conv2 folded into readout)
    bfused_ref : (1, Op)        f32   b2 @ Wr^T + br
    out_ref    : (TB, Op)       f32
    """
    tb, np_, _ = adj_ref.shape
    hp = w1_ref.shape[1]

    # conv1 feature projection: one 2-D bf16 MXU matmul for the whole graph block.
    xw1 = jnp.dot(x_ref[...], w1_ref[...], preferred_element_type=jnp.float32)
    xw1 = xw1.reshape(tb, np_, hp).astype(jnp.bfloat16)

    # conv1 aggregation: per-graph A_hat @ (X W1)  (batched bf16 matmul, f32 accumulate).
    h1 = jnp.einsum('bmn,bnh->bmh', adj_ref[...], xw1,
                    preferred_element_type=jnp.float32)

    # bias + ReLU in f32 on the lane-dense 2-D view.
    h1 = jnp.maximum(h1.reshape(tb * np_, hp) + b1_ref[...], 0.0)

    # Collapsed conv2 + mean readout + Linear:
    #   out = (a_bar @ H1) @ (W2 Wr^T) + (b2 Wr^T + br)
    p = jnp.dot(abar_ref[...], h1, preferred_element_type=jnp.float32)      # (TB, Hp)
    out_ref[...] = (
        jnp.dot(p, w2r_ref[...], preferred_element_type=jnp.float32) + bfused_ref[...]
    )


@functools.partial(jax.jit, static_argnames=("graphs_per_step",))
def gcn_forward(adj_norm, features, w1, b1, w2, b2, wr_t, br, *, graphs_per_step=8):
    """Batched GCNMultiRegressor forward.

    adj_norm : (B, N, N)  symmetrically-normalized dense adjacency (self-loops included)
    features : (B, N, in_feats)
    w1 : (in_feats, hid)   b1 : (1, hid)
    w2 : (hid, hid)        b2 : (1, hid)
    wr_t : (hid, out)      br : (1, out)       (readout Linear weight pre-transposed)
    returns  : (B, out) f32
    """
    b, n, _ = adj_norm.shape
    f_in = features.shape[-1]
    hid = w1.shape[1]
    out_f = wr_t.shape[1]

    tb = graphs_per_step
    bp = _round_up(b, tb)           # graphs, padded to a whole number of blocks
    np_ = _round_up(n, 8)           # nodes, padded to sublane multiple
    fp = _round_up(f_in, 128)       # lane-dense feature dims
    hp = _round_up(hid, 128)
    op = _round_up(out_f, 128)

    f32 = jnp.float32
    bf16 = jnp.bfloat16

    # ---- parameter-only algebraic folds (done once per call, outside the hot loop) ----
    abar = adj_norm.astype(f32).sum(axis=1) / f32(n)               # (B, N) = colsum/N
    w2r = w2.astype(f32) @ wr_t.astype(f32)                        # (hid, out)
    b_fused = b2.astype(f32) @ wr_t.astype(f32) + br.astype(f32)   # (1, out)

    # ---- zero padding to TPU-friendly shapes (exact: zeros contribute nothing) ----
    adj_p = jnp.zeros((bp, np_, np_), bf16).at[:b, :n, :n].set(adj_norm.astype(bf16))
    x_p = (jnp.zeros((bp, np_, fp), bf16)
           .at[:b, :n, :f_in].set(features.astype(bf16))
           .reshape(bp * np_, fp))
    w1_p = jnp.zeros((fp, hp), bf16).at[:f_in, :hid].set(w1.astype(bf16))
    b1_p = jnp.zeros((1, hp), f32).at[:, :hid].set(b1.astype(f32))
    w2r_p = jnp.zeros((hp, op), f32).at[:hid, :out_f].set(w2r)
    bf_p = jnp.zeros((1, op), f32).at[:, :out_f].set(b_fused)

    # Block-diagonal a_bar rows: within a block of TB graphs, row i holds graph i's
    # a_bar at columns [i*Np, (i+1)*Np), so the mean readout is one 2-D matmul.
    abar_p = jnp.zeros((bp, np_), f32).at[:b, :n].set(abar)
    abar_g = abar_p.reshape(bp // tb, tb, np_)
    eye = jnp.eye(tb, dtype=f32)
    abar_bd = (abar_g[:, :, None, :] * eye[None, :, :, None]).reshape(bp, tb * np_)

    grid = (bp // tb,)
    out_p = pl.pallas_call(
        _gcn_kernel,
        out_shape=jax.ShapeDtypeStruct((bp, op), f32),
        grid=grid,
        in_specs=[
            pl.BlockSpec((tb, np_, np_), lambda g: (g, 0, 0)),   # adjacency block
            pl.BlockSpec((tb * np_, fp), lambda g: (g, 0)),      # node-feature block
            pl.BlockSpec((fp, hp), lambda g: (0, 0)),            # W1 (VMEM resident)
            pl.BlockSpec((1, hp), lambda g: (0, 0)),             # b1
            pl.BlockSpec((tb, tb * np_), lambda g: (g, 0)),      # a_bar block rows
            pl.BlockSpec((hp, op), lambda g: (0, 0)),            # W2 @ Wr^T
            pl.BlockSpec((1, op), lambda g: (0, 0)),             # fused bias
        ],
        out_specs=pl.BlockSpec((tb, op), lambda g: (g, 0)),      # lane-dense output slab
        compiler_params=pltpu.CompilerParams(
            dimension_semantics=("parallel",)),                  # shards over TCs (v7x)
    )(adj_p, x_p, w1_p, b1_p, abar_bd, w2r_p, bf_p)

    return out_p[:b, :out_f]


def reference_forward(adj_norm, features, w1, b1, w2, b2, wr_t, br):
    """Straight f32 transcription of the original module (two convs + mean + Linear)."""
    h1 = jnp.maximum(jnp.einsum('bij,bjk->bik', adj_norm, features @ w1) + b1, 0.0)
    h2 = jnp.einsum('bij,bjk->bik', adj_norm, h1 @ w2) + b2
    hg = h2.mean(axis=1)                                          # (B, hid)
    return hg @ wr_t + br                                         # (B, out)


if __name__ == "__main__":
    key = jax.random.PRNGKey(0)
    B, N, IN_F, HID, OUT_F = 16, 8, 16, 32, 4   # 16 molecule-sized graphs, 8 atoms each

    k_adj, k_x, k_w1, k_b1, k_w2, k_b2, k_wr, k_br = jax.random.split(key, 8)

    # Random undirected graphs with guaranteed self-loops (in-degree > 0 everywhere).
    u = jax.random.uniform(k_adj, (B, N, N))
    a = (u < 0.3).astype(jnp.float32)
    a = jnp.maximum(a, jnp.transpose(a, (0, 2, 1)))               # symmetrize
    a = jnp.maximum(a, jnp.eye(N, dtype=jnp.float32)[None])       # self-loops

    # DGL GraphConv norm='both': A_hat = D_in^{-1/2} A D_out^{-1/2}
    deg_in = a.sum(axis=2)                                        # (B, N) row sums
    deg_out = a.sum(axis=1)                                       # (B, N) column sums
    adj_norm = (deg_in[:, :, None] ** -0.5) * a * (deg_out[:, None, :] ** -0.5)

    features = jax.random.normal(k_x, (B, N, IN_F), jnp.float32)
    w1 = 0.1 * jax.random.normal(k_w1, (IN_F, HID), jnp.float32)
    b1 = 0.1 * jax.random.normal(k_b1, (1, HID), jnp.float32)
    w2 = 0.1 * jax.random.normal(k_w2, (HID, HID), jnp.float32)
    b2 = 0.1 * jax.random.normal(k_b2, (1, HID), jnp.float32)
    wr_t = 0.1 * jax.random.normal(k_wr, (HID, OUT_F), jnp.float32)  # Linear weight^T
    br = 0.1 * jax.random.normal(k_br, (1, OUT_F), jnp.float32)

    out = gcn_forward(adj_norm, features, w1, b1, w2, b2, wr_t, br, graphs_per_step=8)
    out = jax.block_until_ready(out)

    ref = reference_forward(adj_norm, features, w1, b1, w2, b2, wr_t, br)
    assert out.shape == (B, OUT_F)
    # bf16 matmul operands -> tolerance loosened from 1e-4 to 1e-2 (per review note).
    assert jnp.allclose(out, ref, atol=1e-2, rtol=1e-2), float(jnp.max(jnp.abs(out - ref)))

    print("KERNEL_OK")
</pallas_src>

<mosaic_0001>
module attributes {stable_mosaic.version = 11 : i64} {
  func.func @_gcn_kernel(%arg0: i32, %arg1: memref<8x8x8xbf16, #tpu.memory_space<vmem>>, %arg2: memref<64x128xbf16, #tpu.memory_space<vmem>>, %arg3: memref<128x128xbf16, #tpu.memory_space<vmem>>, %arg4: memref<1x128xf32, #tpu.memory_space<vmem>>, %arg5: memref<8x64xf32, #tpu.memory_space<vmem>>, %arg6: memref<128x128xf32, #tpu.memory_space<vmem>>, %arg7: memref<1x128xf32, #tpu.memory_space<vmem>>, %arg8: memref<8x128xf32, #tpu.memory_space<vmem>>) attributes {dimension_semantics = [#tpu.dimension_semantics<parallel>], iteration_bounds = array<i64: 2>, scalar_prefetch = 0 : i64, scratch_operands = 0 : i64, tpu.core_type = #tpu.core_type<tc>, window_params = [{transform_indices = @transform_0, window_bounds = array<i64: 8, 8, 8>}, {transform_indices = @transform_1, window_bounds = array<i64: 64, 128>}, {pipeline_mode = #tpu.pipeline_mode<synchronous>, transform_indices = @transform_2, window_bounds = array<i64: 128, 128>}, {pipeline_mode = #tpu.pipeline_mode<synchronous>, transform_indices = @transform_3, window_bounds = array<i64: 1, 128>}, {transform_indices = @transform_4, window_bounds = array<i64: 8, 64>}, {pipeline_mode = #tpu.pipeline_mode<synchronous>, transform_indices = @transform_5, window_bounds = array<i64: 128, 128>}, {pipeline_mode = #tpu.pipeline_mode<synchronous>, transform_indices = @transform_6, window_bounds = array<i64: 1, 128>}, {transform_indices = @transform_7, window_bounds = array<i64: 8, 128>}]} {
    %c0 = arith.constant 0 : index
    %c0_0 = arith.constant 0 : index
    %0 = vector.load %arg2[%c0, %c0_0] : memref<64x128xbf16, #tpu.memory_space<vmem>>, vector<64x128xbf16>
    %c0_1 = arith.constant 0 : index
    %c0_2 = arith.constant 0 : index
    %1 = vector.load %arg3[%c0_1, %c0_2] : memref<128x128xbf16, #tpu.memory_space<vmem>>, vector<128x128xbf16>
    %cst = arith.constant dense<0.000000e+00> : vector<64x128xf32>
    %2 = tpu.matmul %0, %1, %cst {dimension_numbers = #tpu.dot_dimension_numbers<[1], [0], [0], [1], [0, 0, 1, 1], [], []>} : vector<64x128xbf16>, vector<128x128xbf16>, vector<64x128xf32> -> vector<64x128xf32>
    %3 = vector.shape_cast %2 : vector<64x128xf32> to vector<8x8x128xf32>
    %4 = arith.truncf %3 : vector<8x8x128xf32> to vector<8x8x128xbf16>
    %c0_3 = arith.constant 0 : index
    %c0_4 = arith.constant 0 : index
    %c0_5 = arith.constant 0 : index
    %5 = vector.load %arg1[%c0_3, %c0_4, %c0_5] : memref<8x8x8xbf16, #tpu.memory_space<vmem>>, vector<8x8x8xbf16>
    "tpu.trace_start"() <{level = 10 : i32, message = "bmn,bnh->bmh"}> : () -> ()
    %cst_6 = arith.constant dense<0.000000e+00> : vector<8x8x128xf32>
    %6 = tpu.matmul %5, %4, %cst_6 {dimension_numbers = #tpu.dot_dimension_numbers<[2], [1], [1], [2], [0, 0, 0, 1, 1, 2], [0], [0]>} : vector<8x8x8xbf16>, vector<8x8x128xbf16>, vector<8x8x128xf32> -> vector<8x8x128xf32>
    "tpu.trace_stop"() : () -> ()
    %7 = vector.shape_cast %6 : vector<8x8x128xf32> to vector<64x128xf32>
    %c0_7 = arith.constant 0 : index
    %c0_8 = arith.constant 0 : index
    %8 = vector.load %arg4[%c0_7, %c0_8] : memref<1x128xf32, #tpu.memory_space<vmem>>, vector<1x128xf32>
    %9 = vector.broadcast %8 : vector<1x128xf32> to vector<64x128xf32>
    %10 = arith.addf %7, %9 : vector<64x128xf32>
    %cst_9 = arith.constant 0.000000e+00 : f32
    %11 = vector.broadcast %cst_9 : f32 to vector<64x128xf32>
    %12 = arith.maximumf %10, %11 : vector<64x128xf32>
    %c0_10 = arith.constant 0 : index
    %c0_11 = arith.constant 0 : index
    %13 = vector.load %arg5[%c0_10, %c0_11] : memref<8x64xf32, #tpu.memory_space<vmem>>, vector<8x64xf32>
    %cst_12 = arith.constant dense<0.000000e+00> : vector<8x128xf32>
    %14 = tpu.matmul %13, %12, %cst_12 {dimension_numbers = #tpu.dot_dimension_numbers<[1], [0], [0], [1], [0, 0, 1, 1], [], []>} : vector<8x64xf32>, vector<64x128xf32>, vector<8x128xf32> -> vector<8x128xf32>
    %c0_13 = arith.constant 0 : index
    %c0_14 = arith.constant 0 : index
    %15 = vector.load %arg6[%c0_13, %c0_14] : memref<128x128xf32, #tpu.memory_space<vmem>>, vector<128x128xf32>
    %cst_15 = arith.constant dense<0.000000e+00> : vector<8x128xf32>
    %16 = tpu.matmul %14, %15, %cst_15 {dimension_numbers = #tpu.dot_dimension_numbers<[1], [0], [0], [1], [0, 0, 1, 1], [], []>} : vector<8x128xf32>, vector<128x128xf32>, vector<8x128xf32> -> vector<8x128xf32>
    %c0_16 = arith.constant 0 : index
    %c0_17 = arith.constant 0 : index
    %17 = vector.load %arg7[%c0_16, %c0_17] : memref<1x128xf32, #tpu.memory_space<vmem>>, vector<1x128xf32>
    %18 = vector.broadcast %17 : vector<1x128xf32> to vector<8x128xf32>
    %19 = arith.addf %16, %18 : vector<8x128xf32>
    %c0_18 = arith.constant 0 : index
    %c0_19 = arith.constant 0 : index
    %20 = vector.load %arg8[%c0_18, %c0_19] : memref<8x128xf32, #tpu.memory_space<vmem>>, vector<8x128xf32>
    tpu.vector_store %arg8[%c0_18, %c0_19], %19 {strides = array<i32>} : memref<8x128xf32, #tpu.memory_space<vmem>>, vector<8x128xf32>,
    return
  }
  func.func @transform_0(%arg0: i32) -> (i32, i32, i32) {
    %c0_i32 = arith.constant 0 : i32
    %c0_i32_0 = arith.constant 0 : i32
    %c0_i32_1 = arith.constant 0 : i32
    return %arg0, %c0_i32, %c0_i32_0 : i32, i32, i32
  }
  func.func @transform_1(%arg0: i32) -> (i32, i32) {
    %c0_i32 = arith.constant 0 : i32
    %c0_i32_0 = arith.constant 0 : i32
    return %arg0, %c0_i32 : i32, i32
  }
  func.func @transform_2(%arg0: i32) -> (i32, i32) {
    %c0_i32 = arith.constant 0 : i32
    %c0_i32_0 = arith.constant 0 : i32
    %c0_i32_1 = arith.constant 0 : i32
    return %c0_i32, %c0_i32_0 : i32, i32
  }
  func.func @transform_3(%arg0: i32) -> (i32, i32) {
    %c0_i32 = arith.constant 0 : i32
    %c0_i32_0 = arith.constant 0 : i32
    %c0_i32_1 = arith.constant 0 : i32
    return %c0_i32, %c0_i32_0 : i32, i32
  }
  func.func @transform_4(%arg0: i32) -> (i32, i32) {
    %c0_i32 = arith.constant 0 : i32
    %c0_i32_0 = arith.constant 0 : i32
    return %arg0, %c0_i32 : i32, i32
  }
  func.func @transform_5(%arg0: i32) -> (i32, i32) {
    %c0_i32 = arith.constant 0 : i32
    %c0_i32_0 = arith.constant 0 : i32
    %c0_i32_1 = arith.constant 0 : i32
    return %c0_i32, %c0_i32_0 : i32, i32
  }
  func.func @transform_6(%arg0: i32) -> (i32, i32) {
    %c0_i32 = arith.constant 0 : i32
    %c0_i32_0 = arith.constant 0 : i32
    %c0_i32_1 = arith.constant 0 : i32
    return %c0_i32, %c0_i32_0 : i32, i32
  }
  func.func @transform_7(%arg0: i32) -> (i32, i32) {
    %c0_i32 = arith.constant 0 : i32
    %c0_i32_0 = arith.constant 0 : i32
    return %arg0, %c0_i32 : i32, i32
  }
}

</mosaic_0001>

<llo_original>
// kernel: gcn_forward.1
$region0: #{gcn_forward.1}
  #allocation0 [shape = 'u32[]', space=smem, size = 0x4, offset = 0x4, fixed_abs, tag = 'smem constant byte address 0x4 - core index']
  #allocation1 [shape = 'u32[144,128]{1,0:T(1,128)}', space=vmem, size = 0x12000, scoped, tag = 'internal scratch']
  %s0 = inlined_call_operand.vmem [shape: bf16[16,8,8], index: 0, kind: input, shape index: {}]
  %s1 = inlined_call_operand.vmem [shape: bf16[128,128], index: 1, kind: input, shape index: {}]
  %s2 = inlined_call_operand.vmem [shape: bf16[128,128], index: 2, kind: input, shape index: {}]
  %s3 = inlined_call_operand.vmem [shape: f32[1,128], index: 3, kind: input, shape index: {}]
  %s4 = inlined_call_operand.vmem [shape: f32[16,64], index: 4, kind: input, shape index: {}]
  %s5 = inlined_call_operand.vmem [shape: f32[128,128], index: 5, kind: input, shape index: {}]
  %s6 = inlined_call_operand.vmem [shape: f32[1,128], index: 6, kind: input, shape index: {}]
  %s7 = inlined_call_operand.vmem [shape: f32[16,128], index: 7, kind: output, shape index: {}]
  %s8 = sld [smem:[#allocation0]]
  $region61: #{gcn_forward.1} parent=0
    _
  %s10 = ssub.s32 1, %s8
  %s11 = scalar_select 0, %s10, %s8
  loop: start=0, step=1, limit=4
  $region2: #{gcn_forward.1} parent=0 // loop_pre_header
    _
  $region3: #{gcn_forward.1} parent=0 // loop_header
    %s13 = sphi 0, %s17
    %p14 = scmp.ge.s32.totalorder %s13, 4
    %s23 = sphi 0, %s25
    %s26 = sphi 0, %s23
    %s27 = sphi 0, %s26
    %s43 = sphi 0, %s27
    %s49 = sphi 0, %s51
    %s52 = sphi 0, %s49
    %s53 = sphi 0, %s52
    %s69 = sphi 0, %s53
    %s73 = sphi 0, %s73
    %s75 = sphi 0, %s73
    %s76 = sphi 0, %s75
    %s90 = sphi 0, %s76
    %s94 = sphi 0, %s94
    %s96 = sphi 0, %s94
    %s97 = sphi 0, %s96
    %s111 = sphi 0, %s97
    %s117 = sphi 0, %s119
    %s120 = sphi 0, %s117
    %s121 = sphi 0, %s120
    %s137 = sphi 0, %s121
    %s141 = sphi 0, %s141
    %s143 = sphi 0, %s141
    %s144 = sphi 0, %s143
    %s158 = sphi 0, %s144
    %s162 = sphi 0, %s162
    %s164 = sphi 0, %s162
    %s165 = sphi 0, %s164
    %s179 = sphi 0, %s165
    %s185 = sphi 0, %s187
    %s188 = sphi 0, %s185
    %s189 = sphi 0, %s188
    %s205 = sphi 0, %s189
  $region4: #{gcn_forward.1} parent=0 // loop_header_branch
    %16 = sbr.rel (%p14) target = $region8
  $region5: #{gcn_forward.1} parent=0 // loop_body
    %s18 = ssub.s32 %s13, 1
    %s19 = ssub.s32 %s13, 2
    %s20 = sadd.s32 %s13, 1
    %s21 = ssub.s32 %s13, %s20
    %p22 = scmp.eq.s32.totalorder %s21, 0
    %s24 = sadd.s32 %s23, 1
    %s25 = scalar_select %p22, %s23, %s24
    %p28 = pneg %p22
    %p29 = scmp.eq.s32.totalorder %s13, 1
    %p30 = por %p28, %p29
    %p31 = scmp.ne.s32.totalorder %s23, %s26
    %p32 = scmp.eq.s32.totalorder %s13, 0
    %p33 = por %p31, %p32
    %p34 = scmp.ne.s32.totalorder %s23, %s26
    %p35 = scmp.eq.s32.totalorder %s18, 1
    %p36 = por %p34, %p35
    %p37 = scmp.ne.s32.totalorder %s26, %s27
    %p38 = scmp.eq.s32.totalorder %s18, 0
    %p39 = por %p37, %p38
    %p40 = scmp.ne.s32.totalorder %s26, %s27
    %p41 = scmp.eq.s32.totalorder %s19, 1
    %p42 = por %p40, %p41
    %p44 = scmp.ne.s32.totalorder %s27, %s43
    %p45 = scmp.eq.s32.totalorder %s19, 0
    %p46 = por %p44, %p45
    %s47 = ssub.s32 %s13, %s20
    %p48 = scmp.eq.s32.totalorder %s47, 0
    %s50 = sadd.s32 %s49, 1
    %s51 = scalar_select %p48, %s49, %s50
    %p54 = pneg %p48
    %p55 = scmp.eq.s32.totalorder %s13, 1
    %p56 = por %p54, %p55
    %p57 = scmp.ne.s32.totalorder %s49, %s52
    %p58 = scmp.eq.s32.totalorder %s13, 0
    %p59 = por %p57, %p58
    %p60 = scmp.ne.s32.totalorder %s49, %s52
    %p61 = scmp.eq.s32.totalorder %s18, 1
    %p62 = por %p60, %p61
    %p63 = scmp.ne.s32.totalorder %s52, %s53
    %p64 = scmp.eq.s32.totalorder %s18, 0
    %p65 = por %p63, %p64
    %p66 = scmp.ne.s32.totalorder %s52, %s53
    %p67 = scmp.eq.s32.totalorder %s19, 1
    %p68 = por %p66, %p67
    %p70 = scmp.ne.s32.totalorder %s53, %s69
    %p71 = scmp.eq.s32.totalorder %s19, 0
    %p72 = por %p70, %p71
    %s74 = sadd.s32 %s73, 1
    %p77 = scmp.eq.s32.totalorder %s13, 1
    %p78 = scmp.ne.s32.totalorder %s73, %s75
    %p79 = scmp.eq.s32.totalorder %s13, 0
    %p80 = por %p78, %p79
    %p81 = scmp.ne.s32.totalorder %s73, %s75
    %p82 = scmp.eq.s32.totalorder %s18, 1
    %p83 = por %p81, %p82
    %p84 = scmp.ne.s32.totalorder %s75, %s76
    %p85 = scmp.eq.s32.totalorder %s18, 0
    %p86 = por %p84, %p85
    %p87 = scmp.ne.s32.totalorder %s75, %s76
    %p88 = scmp.eq.s32.totalorder %s19, 1
    %p89 = por %p87, %p88
    %p91 = scmp.ne.s32.totalorder %s76, %s90
    %p92 = scmp.eq.s32.totalorder %s19, 0
    %p93 = por %p91, %p92
    %s95 = sadd.s32 %s94, 1
    %p98 = scmp.eq.s32.totalorder %s13, 1
    %p99 = scmp.ne.s32.totalorder %s94, %s96
    %p100 = scmp.eq.s32.totalorder %s13, 0
    %p101 = por %p99, %p100
    %p102 = scmp.ne.s32.totalorder %s94, %s96
    %p103 = scmp.eq.s32.totalorder %s18, 1
    %p104 = por %p102, %p103
    %p105 = scmp.ne.s32.totalorder %s96, %s97
    %p106 = scmp.eq.s32.totalorder %s18, 0
    %p107 = por %p105, %p106
    %p108 = scmp.ne.s32.totalorder %s96, %s97
    %p109 = scmp.eq.s32.totalorder %s19, 1
    %p110 = por %p108, %p109
    %p112 = scmp.ne.s32.totalorder %s97, %s111
    %p113 = scmp.eq.s32.totalorder %s19, 0
    %p114 = por %p112, %p113
    %s115 = ssub.s32 %s13, %s20
    %p116 = scmp.eq.s32.totalorder %s115, 0
    %s118 = sadd.s32 %s117, 1
    %s119 = scalar_select %p116, %s117, %s118
    %p122 = pneg %p116
    %p123 = scmp.eq.s32.totalorder %s13, 1
    %p124 = por %p122, %p123
    %p125 = scmp.ne.s32.totalorder %s117, %s120
    %p126 = scmp.eq.s32.totalorder %s13, 0
    %p127 = por %p125, %p126
    %p128 = scmp.ne.s32.totalorder %s117, %s120
    %p129 = scmp.eq.s32.totalorder %s18, 1
    %p130 = por %p128, %p129
    %p131 = scmp.ne.s32.totalorder %s120, %s121
    %p132 = scmp.eq.s32.totalorder %s18, 0
    %p133 = por %p131, %p132
    %p134 = scmp.ne.s32.totalorder %s120, %s121
    %p135 = scmp.eq.s32.totalorder %s19, 1
    %p136 = por %p134, %p135
    %p138 = scmp.ne.s32.totalorder %s121, %s137
    %p139 = scmp.eq.s32.totalorder %s19, 0
    %p140 = por %p138, %p139
    %s142 = sadd.s32 %s141, 1
    %p145 = scmp.eq.s32.totalorder %s13, 1
    %p146 = scmp.ne.s32.totalorder %s141, %s143
    %p147 = scmp.eq.s32.totalorder %s13, 0
    %p148 = por %p146, %p147
    %p149 = scmp.ne.s32.totalorder %s141, %s143
    %p150 = scmp.eq.s32.totalorder %s18, 1
    %p151 = por %p149, %p150
    %p152 = scmp.ne.s32.totalorder %s143, %s144
    %p153 = scmp.eq.s32.totalorder %s18, 0
    %p154 = por %p152, %p153
    %p155 = scmp.ne.s32.totalorder %s143, %s144
    %p156 = scmp.eq.s32.totalorder %s19, 1
    %p157 = por %p155, %p156
    %p159 = scmp.ne.s32.totalorder %s144, %s158
    %p160 = scmp.eq.s32.totalorder %s19, 0
    %p161 = por %p159, %p160
    %s163 = sadd.s32 %s162, 1
    %p166 = scmp.eq.s32.totalorder %s13, 1
    %p167 = scmp.ne.s32.totalorder %s162, %s164
    %p168 = scmp.eq.s32.totalorder %s13, 0
    %p169 = por %p167, %p168
    %p170 = scmp.ne.s32.totalorder %s162, %s164
    %p171 = scmp.eq.s32.totalorder %s18, 1
    %p172 = por %p170, %p171
    %p173 = scmp.ne.s32.totalorder %s164, %s165
    %p174 = scmp.eq.s32.totalorder %s18, 0
    %p175 = por %p173, %p174
    %p176 = scmp.ne.s32.totalorder %s164, %s165
    %p177 = scmp.eq.s32.totalorder %s19, 1
    %p178 = por %p176, %p177
    %p180 = scmp.ne.s32.totalorder %s165, %s179
    %p181 = scmp.eq.s32.totalorder %s19, 0
    %p182 = por %p180, %p181
    %s183 = ssub.s32 %s13, %s20
    %p184 = scmp.eq.s32.totalorder %s183, 0
    %s186 = sadd.s32 %s185, 1
    %s187 = scalar_select %p184, %s185, %s186
    %p190 = pneg %p184
    %p191 = scmp.eq.s32.totalorder %s13, 1
    %p192 = por %p190, %p191
    %p193 = scmp.ne.s32.totalorder %s185, %s188
    %p194 = scmp.eq.s32.totalorder %s13, 0
    %p195 = por %p193, %p194
    %p196 = scmp.ne.s32.totalorder %s185, %s188
    %p197 = scmp.eq.s32.totalorder %s18, 1
    %p198 = por %p196, %p197
    %p199 = scmp.ne.s32.totalorder %s188, %s189
    %p200 = scmp.eq.s32.totalorder %s18, 0
    %p201 = por %p199, %p200
    %p202 = scmp.ne.s32.totalorder %s188, %s189
    %p203 = scmp.eq.s32.totalorder %s19, 1
    %p204 = por %p202, %p203
    %p206 = scmp.ne.s32.totalorder %s189, %s205
    %p207 = scmp.eq.s32.totalorder %s19, 0
    %p208 = por %p206, %p207
    %p209 = scmp.le.s32.totalorder 1, %s13
    %p210 = scmp.lt.s32.totalorder %s13, 3
    %p211 = pnand %p209, %p210
    %p212 = pneg %p211
    // Predicated region
    $region9: #{gcn_forward.1} parent=5 // pred_check
      _
    $region10: #{gcn_forward.1} parent=5 // pred_check_branch
      %214 = sbr.rel (%p211) target = $region12
    $region11: #{gcn_forward.1} parent=5 // pred_region
      %s215 = ssub.s32 %s13, 1
      // Predicated region
      $region13: #{gcn_forward.1} parent=11 // pred_check
        %p216 = pneg %p86
      $region14: #{gcn_forward.1} parent=11 // pred_check_branch
        %218 = sbr.rel (%p216) target = $region16
      $region15: #{gcn_forward.1} parent=11 // pred_region
        _
      $region16: #{gcn_forward.1} parent=11 // pred_fallthru
        _
      // Predicated region
      $region17: #{gcn_forward.1} parent=11 // pred_check
        %p219 = pneg %p107
      $region18: #{gcn_forward.1} parent=11 // pred_check_branch
        %221 = sbr.rel (%p219) target = $region20
      $region19: #{gcn_forward.1} parent=11 // pred_region
        _
      $region20: #{gcn_forward.1} parent=11 // pred_fallthru
        _
      // Predicated region
      $region21: #{gcn_forward.1} parent=11 // pred_check
        %p222 = pneg %p154
      $region22: #{gcn_forward.1} parent=11 // pred_check_branch
        %224 = sbr.rel (%p222) target = $region24
      $region23: #{gcn_forward.1} parent=11 // pred_region
        _
      $region24: #{gcn_forward.1} parent=11 // pred_fallthru
        _
      // Predicated region
      $region25: #{gcn_forward.1} parent=11 // pred_check
        %p225 = pneg %p175
      $region26: #{gcn_forward.1} parent=11 // pred_check_branch
        %227 = sbr.rel (%p225) target = $region28
      $region27: #{gcn_forward.1} parent=11 // pred_region
        _
      $region28: #{gcn_forward.1} parent=11 // pred_fallthru
        _
    $region12: #{gcn_forward.1} parent=5 // pred_fallthru
      _
    %p228 = scmp.lt.s32.totalorder %s13, 2
    // Predicated region
    $region29: #{gcn_forward.1} parent=5 // pred_check
      %p229 = pneg %p228
    $region30: #{gcn_forward.1} parent=5 // pred_check_branch
      %231 = sbr.rel (%p229) target = $region32
    $region31: #{gcn_forward.1} parent=5 // pred_region
      // Predicated region
      $region33: #{gcn_forward.1} parent=31 // pred_check
        %p232 = pneg %p33
      $region34: #{gcn_forward.1} parent=31 // pred_check_branch
        %234 = sbr.rel (%p232) target = $region36
      $region35: #{gcn_forward.1} parent=31 // pred_region
        %s235 = smul.u32 8, %s13
        %p236 = scmp.lt.s32.totalorder %s235, 15
        %s237 = scalar_select %p236, %s235, 15
        %s238 = smul.addr %s237, 4
        %s239 = scalar_lea.vmem %s0, %s238
        %s240 = smul.u32 8, %s13
      $region36: #{gcn_forward.1} parent=31 // pred_fallthru
        _
      // Predicated region
      $region37: #{gcn_forward.1} parent=31 // pred_check
        %p241 = pneg %p59
      $region38: #{gcn_forward.1} parent=31 // pred_check_branch
        %243 = sbr.rel (%p241) target = $region40
      $region39: #{gcn_forward.1} parent=31 // pred_region
        %s244 = smul.u32 8, %s13
        %p245 = scmp.lt.s32.totalorder %s244, 15
        %s246 = scalar_select %p245, %s244, 15
        %s247 = smul.addr %s246, 4
        %s248 = scalar_lea.vmem %s1, %s247
        %s249 = smul.u32 8, %s13
      $region40: #{gcn_forward.1} parent=31 // pred_fallthru
        _
      // Predicated region
      $region41: #{gcn_forward.1} parent=31 // pred_check
        %p250 = pneg %p127
      $region42: #{gcn_forward.1} parent=31 // pred_check_branch
        %252 = sbr.rel (%p250) target = $region44
      $region43: #{gcn_forward.1} parent=31 // pred_region
        %p253 = scmp.lt.s32.totalorder %s13, 1
        %s254 = scalar_select %p253, %s13, 1
        %s255 = smul.addr %s254, 8
        %s256 = scalar_lea.vmem %s4, %s255
      $region44: #{gcn_forward.1} parent=31 // pred_fallthru
        _
    $region32: #{gcn_forward.1} parent=5 // pred_fallthru
      _
    %p257 = scmp.le.s32.totalorder 1, %s13
    %p258 = scmp.lt.s32.totalorder %s13, 3
    %p259 = pnand %p257, %p258
    %p260 = pneg %p259
    // Predicated region
    $region45: #{gcn_forward.1} parent=5 // pred_check
      _
    $region46: #{gcn_forward.1} parent=5 // pred_check_branch
      %262 = sbr.rel (%p259) target = $region48
    $region47: #{gcn_forward.1} parent=5 // pred_region
      %s263 = ssub.s32 %s13, 1
      %s264 = smul.u32 8, %s18
      %p265 = scmp.lt.s32.totalorder %s264, 15
      %s266 = scalar_select %p265, %s264, 15
      %s267 = smul.addr %s266, 4
      %s268 = scalar_lea.vmem %s0, %s267
      %p269 = pneg %p39
      %p270 = pneg %p36
      %s271 = smul.u32 8, %s18
      %p272 = scmp.lt.s32.totalorder %s271, 15
      %s273 = scalar_select %p272, %s271, 15
      %s274 = smul.addr %s273, 4
      %s275 = scalar_lea.vmem %s1, %s274
      %p276 = pneg %p65
      %p277 = pneg %p62
      %p278 = pneg %p86
      %p279 = pneg %p83
      %p280 = pneg %p107
      %p281 = pneg %p104
      %p282 = scmp.lt.s32.totalorder %s18, 1
      %s283 = scalar_select %p282, %s18, 1
      %s284 = smul.addr %s283, 8
      %s285 = scalar_lea.vmem %s4, %s284
      %p286 = pneg %p133
      %p287 = pneg %p130
      %p288 = pneg %p154
      %p289 = pneg %p151
      %p290 = pneg %p175
      %p291 = pneg %p172
      %p292 = pneg %p201
      %p293 = pneg %p198
      %p294 = scmp.lt.s32.totalorder %s18, 1
      %s295 = scalar_select %p294, %s18, 1
      %s296 = smul.addr %s295, 8
      %s297 = scalar_lea.vmem %s7, %s296
      %s298 = smul.u32 8, %s18
      %p299 = scmp.lt.s32.totalorder %s298, 15
      %s300 = scalar_select %p299, %s298, 15
      %s301 = smul.addr %s300, 4
      %s302 = scalar_lea.vmem %s0, %s301
      %s303 = smul.u32 8, %s18
      %s304 = smul.u32 8, %s18
      %p305 = scmp.lt.s32.totalorder %s304, 15
      %s306 = scalar_select %p305, %s304, 15
      %s307 = smul.addr %s306, 4
      %s308 = scalar_lea.vmem %s1, %s307
      %s309 = smul.u32 8, %s18
      %p310 = scmp.lt.s32.totalorder %s18, 1
      %s311 = scalar_select %p310, %s18, 1
      %s312 = smul.addr %s311, 8
      %s313 = scalar_lea.vmem %s4, %s312
      %p314 = scmp.lt.s32.totalorder %s18, 1
      %s315 = scalar_select %p314, %s18, 1
      %s316 = smul.addr %s315, 8
      %s317 = scalar_lea.vmem %s7, %s316
      %v319 = vld [vmem:[%s308] sm:$0xf]
      %v320 = vld [vmem:[%s308 + $0x4] sm:$0xf]
      %v321 = vld [vmem:[%s308 + $0x8] sm:$0xf]
      %v322 = vld [vmem:[%s308 + $0xc] sm:$0xf]
      %v323 = vld [vmem:[%s308 + $0x10] sm:$0xf]
      %v324 = vld [vmem:[%s308 + $0x14] sm:$0xf]
      %v325 = vld [vmem:[%s308 + $0x18] sm:$0xf]
      %v326 = vld [vmem:[%s308 + $0x1c] sm:$0xf]
      %v327 = vld [vmem:[%s2] sm:$0xf]
      %v328 = vld [vmem:[%s2 + $0x4] sm:$0xf]
      %v329 = vld [vmem:[%s2 + $0x8] sm:$0xf]
      %v330 = vld [vmem:[%s2 + $0xc] sm:$0xf]
      %v331 = vld [vmem:[%s2 + $0x10] sm:$0xf]
      %v332 = vld [vmem:[%s2 + $0x14] sm:$0xf]
      %v333 = vld [vmem:[%s2 + $0x18] sm:$0xf]
      %v334 = vld [vmem:[%s2 + $0x1c] sm:$0xf]
      %v335 = vld [vmem:[%s2 + $0x20] sm:$0xf]
      %v336 = vld [vmem:[%s2 + $0x24] sm:$0xf]
      %v337 = vld [vmem:[%s2 + $0x28] sm:$0xf]
      %v338 = vld [vmem:[%s2 + $0x2c] sm:$0xf]
      %v339 = vld [vmem:[%s2 + $0x30] sm:$0xf]
      %v340 = vld [vmem:[%s2 + $0x34] sm:$0xf]
      %v341 = vld [vmem:[%s2 + $0x38] sm:$0xf]
      %v342 = vld [vmem:[%s2 + $0x3c] sm:$0xf]
      %v351 = vunpack.c.l.b16 %v319
      %v352 = vunpack.c.l.b16 %v320
      %v353 = vunpack.c.l.b16 %v321
      %v354 = vunpack.c.l.b16 %v322
      %v355 = vunpack.c.l.b16 %v323
      %v356 = vunpack.c.l.b16 %v324
      %v357 = vunpack.c.l.b16 %v325
      %v358 = vunpack.c.l.b16 %v326
      %v359 = vpack.c.b16 %v352, %v351
      %v360 = vpack.c.b16 %v354, %v353
      %v361 = vpack.c.b16 %v356, %v355
      %v362 = vpack.c.b16 %v358, %v357
      %v383 = vunpack.c.l.b16 %v327
      %v384 = vunpack.c.l.b16 %v328
      %v385 = vunpack.c.l.b16 %v329
      %v386 = vunpack.c.l.b16 %v330
      %v387 = vunpack.c.l.b16 %v331
      %v388 = vunpack.c.l.b16 %v332
      %v389 = vunpack.c.l.b16 %v333
      %v390 = vunpack.c.l.b16 %v334
      %v391 = vunpack.c.l.b16 %v335
      %v392 = vunpack.c.l.b16 %v336
      %v393 = vunpack.c.l.b16 %v337
      %v394 = vunpack.c.l.b16 %v338
      %v395 = vunpack.c.l.b16 %v339
      %v396 = vunpack.c.l.b16 %v340
      %v397 = vunpack.c.l.b16 %v341
      %v398 = vunpack.c.l.b16 %v342
      %v399 = vpack.c.b16 %v384, %v383
      %v400 = vpack.c.b16 %v386, %v385
      %v401 = vpack.c.b16 %v388, %v387
      %v402 = vpack.c.b16 %v390, %v389
      %v403 = vpack.c.b16 %v392, %v391
      %v404 = vpack.c.b16 %v394, %v393
      %v405 = vpack.c.b16 %v396, %v395
      %v406 = vpack.c.b16 %v398, %v397
      %415 = vmatprep.subr.bf16.mxu0 0
      %416 = vmatpush1.bf16.msra.mxu0 %v399
      %417 = vmatprep.subr.bf16.mxu0 0
      %418 = vmatpush1.bf16.msra.mxu0 %v400
      %419 = vmatprep.subr.bf16.mxu0 0
      %420 = vmatpush1.bf16.msra.mxu0 %v401
      %421 = vmatprep.subr.bf16.mxu0 0
      %422 = vmatpush1.bf16.msra.mxu0 %v402
      %423 = vmatprep.subr.bf16.mxu0 0
      %424 = vmatpush1.bf16.msra.mxu0 %v403
      %425 = vmatprep.subr.bf16.mxu0 0
      %426 = vmatpush1.bf16.msra.mxu0 %v404
      %427 = vmatprep.subr.bf16.mxu0 0
      %428 = vmatpush1.bf16.msra.mxu0 %v405
      %429 = vmatprep.subr.bf16.mxu0 0
      %430 = vmatpush1.bf16.msra.mxu0 %v406
      %431 = vmatprep.subr.bf16.mxu0 0
      %432 = vmatpush1.bf16.msra.mxu0 0
      %433 = vmatprep.subr.bf16.mxu0 0
      %434 = vmatpush1.bf16.msra.mxu0 0
      %435 = vmatprep.subr.bf16.mxu0 0
      %436 = vmatpush1.bf16.msra.mxu0 0
      %437 = vmatprep.subr.bf16.mxu0 0
      %438 = vmatpush1.bf16.msra.mxu0 0
      %439 = vmatprep.subr.bf16.mxu0 0
      %440 = vmatpush1.bf16.msra.mxu0 0
      %441 = vmatprep.subr.bf16.mxu0 0
      %442 = vmatpush1.bf16.msra.mxu0 0
      %443 = vmatprep.subr.bf16.mxu0 0
      %444 = vmatpush1.bf16.msra.mxu0 0
      %445 = vmatprep.subr.bf16.mxu0 0
      %446 = vmatpush1.bf16.msra.mxu0 0
      %447 = vmatprep.mubr.bf16.mxu0 0
      %448 = vmatmul.mubr.bf16.gmra.mrb[0].mxu0 %v359
      %v449 = vpop.f32.mrb[0].mxu0
      %v450 = vadd.f32 0.0, %v449
      %v451 = vpop.f32.mrb[0].mxu0
      %v452 = vpop.f32.mrb[0].mxu0
      %v453 = vadd.f32 0.0, %v452
      %v454 = vpop.f32.mrb[0].mxu0
      %455 = vmatprep.mubr.bf16.mxu0 0
      %456 = vmatmul.mubr.bf16.gmra.mrb[0].mxu0 %v360
      %v457 = vpop.f32.mrb[0].mxu0
      %v458 = vadd.f32 0.0, %v457
      %v459 = vpop.f32.mrb[0].mxu0
      %v460 = vpop.f32.mrb[0].mxu0
      %v461 = vadd.f32 0.0, %v460
      %v462 = vpop.f32.mrb[0].mxu0
      %463 = vmatprep.mubr.bf16.mxu0 0
      %464 = vmatmul.mubr.bf16.gmra.mrb[0].mxu0 %v361
      %v465 = vpop.f32.mrb[0].mxu0
      %v466 = vadd.f32 0.0, %v465
      %v467 = vpop.f32.mrb[0].mxu0
      %v468 = vpop.f32.mrb[0].mxu0
      %v469 = vadd.f32 0.0, %v468
      %v470 = vpop.f32.mrb[0].mxu0
      %471 = vmatprep.mubr.bf16.mxu0 0
      %472 = vmatmul.mubr.bf16.gmra.mrb[0].mxu0 %v362
      %v473 = vpop.f32.mrb[0].mxu0
      %v474 = vadd.f32 0.0, %v473
      %v475 = vpop.f32.mrb[0].mxu0
      %v476 = vpop.f32.mrb[0].mxu0
      %v477 = vadd.f32 0.0, %v476
      %v478 = vpop.f32.mrb[0].mxu0
      %479 = vdwg.mxu0
      %v480 = vpack.c.bf16 %v450, %v450
      %v481 = vpack.c.bf16 %v453, %v453
      %v482 = vpack.c.bf16 %v458, %v458
      %v483 = vpack.c.bf16 %v461, %v461
      %v484 = vpack.c.bf16 %v466, %v466
      %v485 = vpack.c.bf16 %v469, %v469
      %v486 = vpack.c.bf16 %v474, %v474
      %v487 = vpack.c.bf16 %v477, %v477
      %v488 = vld [vmem:[%s302] sm:$0xf]
      %v489 = vld [vmem:[%s302 + $0x4] sm:$0xf]
      %v490 = vld [vmem:[%s302 + $0x8] sm:$0xf]
      %v491 = vld [vmem:[%s302 + $0xc] sm:$0xf]
      %v492 = vld [vmem:[%s302 + $0x10] sm:$0xf]
      %v493 = vld [vmem:[%s302 + $0x14] sm:$0xf]
      %v494 = vld [vmem:[%s302 + $0x18] sm:$0xf]
      %v495 = vld [vmem:[%s302 + $0x1c] sm:$0xf]
      %vm496 = vcmask 64512
      %v498 = vsel %vm496, %v488, 0
      %vm500 = vcmask 1043456
      %v502 = vsel %vm500, %v480, 0
      %504 = vmatprep.subr.bf16.mxu0 0
      %505 = vmatpush1.bf16.msra.mxu0 %v502
      %506 = vmatprep.subr.bf16.mxu0 0
      %507 = vmatpush1.bf16.msra.mxu0 0
      %508 = vmatprep.subr.bf16.mxu0 0
      %509 = vmatpush1.bf16.msra.mxu0 0
      %510 = vmatprep.subr.bf16.mxu0 0
      %511 = vmatpush1.bf16.msra.mxu0 0
      %512 = vmatprep.subr.bf16.mxu0 0
      %513 = vmatpush1.bf16.msra.mxu0 0
      %514 = vmatprep.subr.bf16.mxu0 0
      %515 = vmatpush1.bf16.msra.mxu0 0
      %516 = vmatprep.subr.bf16.mxu0 0
      %517 = vmatpush1.bf16.msra.mxu0 0
      %518 = vmatprep.subr.bf16.mxu0 0
      %519 = vmatpush1.bf16.msra.mxu0 0
      %520 = vmatprep.subr.bf16.mxu0 0
      %521 = vmatpush1.bf16.msra.mxu0 0
      %522 = vmatprep.subr.bf16.mxu0 0
      %523 = vmatpush1.bf16.msra.mxu0 0
      %524 = vmatprep.subr.bf16.mxu0 0
      %525 = vmatpush1.bf16.msra.mxu0 0
      %526 = vmatprep.subr.bf16.mxu0 0
      %527 = vmatpush1.bf16.msra.mxu0 0
      %528 = vmatprep.subr.bf16.mxu0 0
      %529 = vmatpush1.bf16.msra.mxu0 0
      %530 = vmatprep.subr.bf16.mxu0 0
      %531 = vmatpush1.bf16.msra.mxu0 0
      %532 = vmatprep.subr.bf16.mxu0 0
      %533 = vmatpush1.bf16.msra.mxu0 0
      %534 = vmatprep.subr.bf16.mxu0 0
      %535 = vmatpush1.bf16.msra.mxu0 0
      %536 = vmatprep.mubr.bf16.mxu0 0
      %537 = vmatmul.mubr.bf16.gmra.mrb[0].mxu0 %v498
      %v538 = vpop.f32.mrb[0].mxu0
      %v539 = vadd.f32 0.0, %v538
      %v540 = vpop.f32.mrb[0].mxu0
      %v541 = vpop.f32.mrb[0].mxu0
      %v542 = vpop.f32.mrb[0].mxu0
      %543 = vdwg.mxu0
      %v545 = vsel %vm496, %v489, 0
      %v548 = vsel %vm500, %v481, 0
      %550 = vmatprep.subr.bf16.mxu0 0
      %551 = vmatpush1.bf16.msra.mxu0 %v548
      %552 = vmatprep.subr.bf16.mxu0 0
      %553 = vmatpush1.bf16.msra.mxu0 0
      %554 = vmatprep.subr.bf16.mxu0 0
      %555 = vmatpush1.bf16.msra.mxu0 0
      %556 = vmatprep.subr.bf16.mxu0 0
      %557 = vmatpush1.bf16.msra.mxu0 0
      %558 = vmatprep.subr.bf16.mxu0 0
      %559 = vmatpush1.bf16.msra.mxu0 0
      %560 = vmatprep.subr.bf16.mxu0 0
      %561 = vmatpush1.bf16.msra.mxu0 0
      %562 = vmatprep.subr.bf16.mxu0 0
      %563 = vmatpush1.bf16.msra.mxu0 0
      %564 = vmatprep.subr.bf16.mxu0 0
      %565 = vmatpush1.bf16.msra.mxu0 0
      %566 = vmatprep.subr.bf16.mxu0 0
      %567 = vmatpush1.bf16.msra.mxu0 0
      %568 = vmatprep.subr.bf16.mxu0 0
      %569 = vmatpush1.bf16.msra.mxu0 0
      %570 = vmatprep.subr.bf16.mxu0 0
      %571 = vmatpush1.bf16.msra.mxu0 0
      %572 = vmatprep.subr.bf16.mxu0 0
      %573 = vmatpush1.bf16.msra.mxu0 0
      %574 = vmatprep.subr.bf16.mxu0 0
      %575 = vmatpush1.bf16.msra.mxu0 0
      %576 = vmatprep.subr.bf16.mxu0 0
      %577 = vmatpush1.bf16.msra.mxu0 0
      %578 = vmatprep.subr.bf16.mxu0 0
      %579 = vmatpush1.bf16.msra.mxu0 0
      %580 = vmatprep.subr.bf16.mxu0 0
      %581 = vmatpush1.bf16.msra.mxu0 0
      %582 = vmatprep.mubr.bf16.mxu0 0
      %583 = vmatmul.mubr.bf16.gmra.mrb[0].mxu0 %v545
      %v584 = vpop.f32.mrb[0].mxu0
      %v585 = vadd.f32 0.0, %v584
      %v586 = vpop.f32.mrb[0].mxu0
      %v587 = vpop.f32.mrb[0].mxu0
      %v588 = vpop.f32.mrb[0].mxu0
      %589 = vdwg.mxu0
      %v591 = vsel %vm496, %v490, 0
      %v594 = vsel %vm500, %v482, 0
      %596 = vmatprep.subr.bf16.mxu0 0
      %597 = vmatpush1.bf16.msra.mxu0 %v594
      %598 = vmatprep.subr.bf16.mxu0 0
      %599 = vmatpush1.bf16.msra.mxu0 0
      %600 = vmatprep.subr.bf16.mxu0 0
      %601 = vmatpush1.bf16.msra.mxu0 0
      %602 = vmatprep.subr.bf16.mxu0 0
      %603 = vmatpush1.bf16.msra.mxu0 0
      %604 = vmatprep.subr.bf16.mxu0 0
      %605 = vmatpush1.bf16.msra.mxu0 0
      %606 = vmatprep.subr.bf16.mxu0 0
      %607 = vmatpush1.bf16.msra.mxu0 0
      %608 = vmatprep.subr.bf16.mxu0 0
      %609 = vmatpush1.bf16.msra.mxu0 0
      %610 = vmatprep.subr.bf16.mxu0 0
      %611 = vmatpush1.bf16.msra.mxu0 0
      %612 = vmatprep.subr.bf16.mxu0 0
      %613 = vmatpush1.bf16.msra.mxu0 0
      %614 = vmatprep.subr.bf16.mxu0 0
      %615 = vmatpush1.bf16.msra.mxu0 0
      %616 = vmatprep.subr.bf16.mxu0 0
      %617 = vmatpush1.bf16.msra.mxu0 0
      %618 = vmatprep.subr.bf16.mxu0 0
      %619 = vmatpush1.bf16.msra.mxu0 0
      %620 = vmatprep.subr.bf16.mxu0 0
      %621 = vmatpush1.bf16.msra.mxu0 0
      %622 = vmatprep.subr.bf16.mxu0 0
      %623 = vmatpush1.bf16.msra.mxu0 0
      %624 = vmatprep.subr.bf16.mxu0 0
      %625 = vmatpush1.bf16.msra.mxu0 0
      %626 = vmatprep.subr.bf16.mxu0 0
      %627 = vmatpush1.bf16.msra.mxu0 0
      %628 = vmatprep.mubr.bf16.mxu0 0
      %629 = vmatmul.mubr.bf16.gmra.mrb[0].mxu0 %v591
      %v630 = vpop.f32.mrb[0].mxu0
      %v631 = vadd.f32 0.0, %v630
      %v632 = vpop.f32.mrb[0].mxu0
      %v633 = vpop.f32.mrb[0].mxu0
      %v634 = vpop.f32.mrb[0].mxu0
      %635 = vdwg.mxu0
      %v637 = vsel %vm496, %v491, 0
      %v640 = vsel %vm500, %v483, 0
      %642 = vmatprep.subr.bf16.mxu0 0
      %643 = vmatpush1.bf16.msra.mxu0 %v640
      %644 = vmatprep.subr.bf16.mxu0 0
      %645 = vmatpush1.bf16.msra.mxu0 0
      %646 = vmatprep.subr.bf16.mxu0 0
      %647 = vmatpush1.bf16.msra.mxu0 0
      %648 = vmatprep.subr.bf16.mxu0 0
      %649 = vmatpush1.bf16.msra.mxu0 0
      %650 = vmatprep.subr.bf16.mxu0 0
      %651 = vmatpush1.bf16.msra.mxu0 0
      %652 = vmatprep.subr.bf16.mxu0 0
      %653 = vmatpush1.bf16.msra.mxu0 0
      %654 = vmatprep.subr.bf16.mxu0 0
      %655 = vmatpush1.bf16.msra.mxu0 0
      %656 = vmatprep.subr.bf16.mxu0 0
      %657 = vmatpush1.bf16.msra.mxu0 0
      %658 = vmatprep.subr.bf16.mxu0 0
      %659 = vmatpush1.bf16.msra.mxu0 0
      %660 = vmatprep.subr.bf16.mxu0 0
      %661 = vmatpush1.bf16.msra.mxu0 0
      %662 = vmatprep.subr.bf16.mxu0 0
      %663 = vmatpush1.bf16.msra.mxu0 0
      %664 = vmatprep.subr.bf16.mxu0 0
      %665 = vmatpush1.bf16.msra.mxu0 0
      %666 = vmatprep.subr.bf16.mxu0 0
      %667 = vmatpush1.bf16.msra.mxu0 0
      %668 = vmatprep.subr.bf16.mxu0 0
      %669 = vmatpush1.bf16.msra.mxu0 0
      %670 = vmatprep.subr.bf16.mxu0 0
      %671 = vmatpush1.bf16.msra.mxu0 0
      %672 = vmatprep.subr.bf16.mxu0 0
      %673 = vmatpush1.bf16.msra.mxu0 0
      %674 = vmatprep.mubr.bf16.mxu0 0
      %675 = vmatmul.mubr.bf16.gmra.mrb[0].mxu0 %v637
      %v676 = vpop.f32.mrb[0].mxu0
      %v677 = vadd.f32 0.0, %v676
      %v678 = vpop.f32.mrb[0].mxu0
      %v679 = vpop.f32.mrb[0].mxu0
      %v680 = vpop.f32.mrb[0].mxu0
      %681 = vdwg.mxu0
      %v683 = vsel %vm496, %v492, 0
      %v686 = vsel %vm500, %v484, 0
      %688 = vmatprep.subr.bf16.mxu0 0
      %689 = vmatpush1.bf16.msra.mxu0 %v686
      %690 = vmatprep.subr.bf16.mxu0 0
      %691 = vmatpush1.bf16.msra.mxu0 0
      %692 = vmatprep.subr.bf16.mxu0 0
      %693 = vmatpush1.bf16.msra.mxu0 0
      %694 = vmatprep.subr.bf16.mxu0 0
      %695 = vmatpush1.bf16.msra.mxu0 0
      %696 = vmatprep.subr.bf16.mxu0 0
      %697 = vmatpush1.bf16.msra.mxu0 0
      %698 = vmatprep.subr.bf16.mxu0 0
      %699 = vmatpush1.bf16.msra.mxu0 0
      %700 = vmatprep.subr.bf16.mxu0 0
      %701 = vmatpush1.bf16.msra.mxu0 0
      %702 = vmatprep.subr.bf16.mxu0 0
      %703 = vmatpush1.bf16.msra.mxu0 0
      %704 = vmatprep.subr.bf16.mxu0 0
      %705 = vmatpush1.bf16.msra.mxu0 0
      %706 = vmatprep.subr.bf16.mxu0 0
      %707 = vmatpush1.bf16.msra.mxu0 0
      %708 = vmatprep.subr.bf16.mxu0 0
      %709 = vmatpush1.bf16.msra.mxu0 0
      %710 = vmatprep.subr.bf16.mxu0 0
      %711 = vmatpush1.bf16.msra.mxu0 0
      %712 = vmatprep.subr.bf16.mxu0 0
      %713 = vmatpush1.bf16.msra.mxu0 0
      %714 = vmatprep.subr.bf16.mxu0 0
      %715 = vmatpush1.bf16.msra.mxu0 0
      %716 = vmatprep.subr.bf16.mxu0 0
      %717 = vmatpush1.bf16.msra.mxu0 0
      %718 = vmatprep.subr.bf16.mxu0 0
      %719 = vmatpush1.bf16.msra.mxu0 0
      %720 = vmatprep.mubr.bf16.mxu0 0
      %721 = vmatmul.mubr.bf16.gmra.mrb[0].mxu0 %v683
      %v722 = vpop.f32.mrb[0].mxu0
      %v723 = vadd.f32 0.0, %v722
      %v724 = vpop.f32.mrb[0].mxu0
      %v725 = vpop.f32.mrb[0].mxu0
      %v726 = vpop.f32.mrb[0].mxu0
      %727 = vdwg.mxu0
      %v729 = vsel %vm496, %v493, 0
      %v732 = vsel %vm500, %v485, 0
      %734 = vmatprep.subr.bf16.mxu0 0
      %735 = vmatpush1.bf16.msra.mxu0 %v732
      %736 = vmatprep.subr.bf16.mxu0 0
      %737 = vmatpush1.bf16.msra.mxu0 0
      %738 = vmatprep.subr.bf16.mxu0 0
      %739 = vmatpush1.bf16.msra.mxu0 0
      %740 = vmatprep.subr.bf16.mxu0 0
      %741 = vmatpush1.bf16.msra.mxu0 0
      %742 = vmatprep.subr.bf16.mxu0 0
      %743 = vmatpush1.bf16.msra.mxu0 0
      %744 = vmatprep.subr.bf16.mxu0 0
      %745 = vmatpush1.bf16.msra.mxu0 0
      %746 = vmatprep.subr.bf16.mxu0 0
      %747 = vmatpush1.bf16.msra.mxu0 0
      %748 = vmatprep.subr.bf16.mxu0 0
      %749 = vmatpush1.bf16.msra.mxu0 0
      %750 = vmatprep.subr.bf16.mxu0 0
      %751 = vmatpush1.bf16.msra.mxu0 0
      %752 = vmatprep.subr.bf16.mxu0 0
      %753 = vmatpush1.bf16.msra.mxu0 0
      %754 = vmatprep.subr.bf16.mxu0 0
      %755 = vmatpush1.bf16.msra.mxu0 0
      %756 = vmatprep.subr.bf16.mxu0 0
      %757 = vmatpush1.bf16.msra.mxu0 0
      %758 = vmatprep.subr.bf16.mxu0 0
      %759 = vmatpush1.bf16.msra.mxu0 0
      %760 = vmatprep.subr.bf16.mxu0 0
      %761 = vmatpush1.bf16.msra.mxu0 0
      %762 = vmatprep.subr.bf16.mxu0 0
      %763 = vmatpush1.bf16.msra.mxu0 0
      %764 = vmatprep.subr.bf16.mxu0 0
      %765 = vmatpush1.bf16.msra.mxu0 0
      %766 = vmatprep.mubr.bf16.mxu0 0
      %767 = vmatmul.mubr.bf16.gmra.mrb[0].mxu0 %v729
      %v768 = vpop.f32.mrb[0].mxu0
      %v769 = vadd.f32 0.0, %v768
      %v770 = vpop.f32.mrb[0].mxu0
      %v771 = vpop.f32.mrb[0].mxu0
      %v772 = vpop.f32.mrb[0].mxu0
      %773 = vdwg.mxu0
      %v775 = vsel %vm496, %v494, 0
      %v778 = vsel %vm500, %v486, 0
      %780 = vmatprep.subr.bf16.mxu0 0
      %781 = vmatpush1.bf16.msra.mxu0 %v778
      %782 = vmatprep.subr.bf16.mxu0 0
      %783 = vmatpush1.bf16.msra.mxu0 0
      %784 = vmatprep.subr.bf16.mxu0 0
      %785 = vmatpush1.bf16.msra.mxu0 0
      %786 = vmatprep.subr.bf16.mxu0 0
      %787 = vmatpush1.bf16.msra.mxu0 0
      %788 = vmatprep.subr.bf16.mxu0 0
      %789 = vmatpush1.bf16.msra.mxu0 0
      %790 = vmatprep.subr.bf16.mxu0 0
      %791 = vmatpush1.bf16.msra.mxu0 0
      %792 = vmatprep.subr.bf16.mxu0 0
      %793 = vmatpush1.bf16.msra.mxu0 0
      %794 = vmatprep.subr.bf16.mxu0 0
      %795 = vmatpush1.bf16.msra.mxu0 0
      %796 = vmatprep.subr.bf16.mxu0 0
      %797 = vmatpush1.bf16.msra.mxu0 0
      %798 = vmatprep.subr.bf16.mxu0 0
      %799 = vmatpush1.bf16.msra.mxu0 0
      %800 = vmatprep.subr.bf16.mxu0 0
      %801 = vmatpush1.bf16.msra.mxu0 0
      %802 = vmatprep.subr.bf16.mxu0 0
      %803 = vmatpush1.bf16.msra.mxu0 0
      %804 = vmatprep.subr.bf16.mxu0 0
      %805 = vmatpush1.bf16.msra.mxu0 0
      %806 = vmatprep.subr.bf16.mxu0 0
      %807 = vmatpush1.bf16.msra.mxu0 0
      %808 = vmatprep.subr.bf16.mxu0 0
      %809 = vmatpush1.bf16.msra.mxu0 0
      %810 = vmatprep.subr.bf16.mxu0 0
      %811 = vmatpush1.bf16.msra.mxu0 0
      %812 = vmatprep.mubr.bf16.mxu0 0
      %813 = vmatmul.mubr.bf16.gmra.mrb[0].mxu0 %v775
      %v814 = vpop.f32.mrb[0].mxu0
      %v815 = vadd.f32 0.0, %v814
      %v816 = vpop.f32.mrb[0].mxu0
      %v817 = vpop.f32.mrb[0].mxu0
      %v818 = vpop.f32.mrb[0].mxu0
      %819 = vdwg.mxu0
      %v821 = vsel %vm496, %v495, 0
      %v824 = vsel %vm500, %v487, 0
      %826 = vmatprep.subr.bf16.mxu0 0
      %827 = vmatpush1.bf16.msra.mxu0 %v824
      %828 = vmatprep.subr.bf16.mxu0 0
      %829 = vmatpush1.bf16.msra.mxu0 0
      %830 = vmatprep.subr.bf16.mxu0 0
      %831 = vmatpush1.bf16.msra.mxu0 0
      %832 = vmatprep.subr.bf16.mxu0 0
      %833 = vmatpush1.bf16.msra.mxu0 0
      %834 = vmatprep.subr.bf16.mxu0 0
      %835 = vmatpush1.bf16.msra.mxu0 0
      %836 = vmatprep.subr.bf16.mxu0 0
      %837 = vmatpush1.bf16.msra.mxu0 0
      %838 = vmatprep.subr.bf16.mxu0 0
      %839 = vmatpush1.bf16.msra.mxu0 0
      %840 = vmatprep.subr.bf16.mxu0 0
      %841 = vmatpush1.bf16.msra.mxu0 0
      %842 = vmatprep.subr.bf16.mxu0 0
      %843 = vmatpush1.bf16.msra.mxu0 0
      %844 = vmatprep.subr.bf16.mxu0 0
      %845 = vmatpush1.bf16.msra.mxu0 0
      %846 = vmatprep.subr.bf16.mxu0 0
      %847 = vmatpush1.bf16.msra.mxu0 0
      %848 = vmatprep.subr.bf16.mxu0 0
      %849 = vmatpush1.bf16.msra.mxu0 0
      %850 = vmatprep.subr.bf16.mxu0 0
      %851 = vmatpush1.bf16.msra.mxu0 0
      %852 = vmatprep.subr.bf16.mxu0 0
      %853 = vmatpush1.bf16.msra.mxu0 0
      %854 = vmatprep.subr.bf16.mxu0 0
      %855 = vmatpush1.bf16.msra.mxu0 0
      %856 = vmatprep.subr.bf16.mxu0 0
      %857 = vmatpush1.bf16.msra.mxu0 0
      %858 = vmatprep.mubr.bf16.mxu0 0
      %859 = vmatmul.mubr.bf16.gmra.mrb[0].mxu0 %v821
      %v860 = vpop.f32.mrb[0].mxu0
      %v861 = vadd.f32 0.0, %v860
      %v862 = vpop.f32.mrb[0].mxu0
      %v863 = vpop.f32.mrb[0].mxu0
      %v864 = vpop.f32.mrb[0].mxu0
      %865 = vdwg.mxu0
      %v866 = vld [vmem:[%s3] sm:$0x1]
      %v868 = vlaneseq
      %v869 = vshrl.u32 %v868, 7
      %v870 = vsub.s32 0, %v869
      %v871 = vrot.slane %v866, %v870
      %v873 = vadd.f32 %v539, %v871
      %v874 = vadd.f32 %v585, %v871
      %v875 = vadd.f32 %v631, %v871
      %v876 = vadd.f32 %v677, %v871
      %v877 = vadd.f32 %v723, %v871
      %v878 = vadd.f32 %v769, %v871
      %v879 = vadd.f32 %v815, %v871
      %v880 = vadd.f32 %v861, %v871
      %v881 = vmax.f32 %v873, 0.0
      %v882 = vmax.f32 %v874, 0.0
      %v883 = vmax.f32 %v875, 0.0
      %v884 = vmax.f32 %v876, 0.0
      %v885 = vmax.f32 %v877, 0.0
      %v886 = vmax.f32 %v878, 0.0
      %v887 = vmax.f32 %v879, 0.0
      %v888 = vmax.f32 %v880, 0.0
      %v889 = vld [vmem:[%s313] sm:$0xff]
      %vm890 = vcmask 523264
      %v892 = vsel %vm890, %v889, 0
      %894 = vmatprep.subr.mxu0 0.0
      %895 = vmatpush1.msra.mxu0 %v881
      %896 = vmatprep.subr.mxu0 0.0
      %897 = vmatpush1.msra.mxu0 %v882
      %898 = vmatprep.subr.mxu0 0.0
      %899 = vmatpush1.msra.mxu0 %v883
      %900 = vmatprep.subr.mxu0 0.0
      %901 = vmatpush1.msra.mxu0 %v884
      %902 = vmatprep.subr.mxu0 0.0
      %903 = vmatpush1.msra.mxu0 %v885
      %904 = vmatprep.subr.mxu0 0.0
      %905 = vmatpush1.msra.mxu0 %v886
      %906 = vmatprep.subr.mxu0 0.0
      %907 = vmatpush1.msra.mxu0 %v887
      %908 = vmatprep.subr.mxu0 0.0
      %909 = vmatpush1.msra.mxu0 %v888
      %910 = vmatprep.subr.mxu0 0.0
      %911 = vmatpush1.msra.mxu0 0.0
      %912 = vmatprep.subr.mxu0 0.0
      %913 = vmatpush1.msra.mxu0 0.0
      %914 = vmatprep.subr.mxu0 0.0
      %915 = vmatpush1.msra.mxu0 0.0
      %916 = vmatprep.subr.mxu0 0.0
      %917 = vmatpush1.msra.mxu0 0.0
      %918 = vmatprep.subr.mxu0 0.0
      %919 = vmatpush1.msra.mxu0 0.0
      %920 = vmatprep.subr.mxu0 0.0
      %921 = vmatpush1.msra.mxu0 0.0
      %922 = vmatprep.subr.mxu0 0.0
      %923 = vmatpush1.msra.mxu0 0.0
      %924 = vmatprep.subr.mxu0 0.0
      %925 = vmatpush1.msra.mxu0 0.0
      %926 = vmatprep.subr.mxu0 0.0
      %927 = vmatpush1.msra.mxu0 0.0
      %928 = vmatprep.subr.mxu0 0.0
      %929 = vmatpush1.msra.mxu0 0.0
      %930 = vmatprep.subr.mxu0 0.0
      %931 = vmatpush1.msra.mxu0 0.0
      %932 = vmatprep.subr.mxu0 0.0
      %933 = vmatpush1.msra.mxu0 0.0
      %934 = vmatprep.subr.mxu0 0.0
      %935 = vmatpush1.msra.mxu0 0.0
      %936 = vmatprep.subr.mxu0 0.0
      %937 = vmatpush1.msra.mxu0 0.0
      %938 = vmatprep.subr.mxu0 0.0
      %939 = vmatpush1.msra.mxu0 0.0
      %940 = vmatprep.subr.mxu0 0.0
      %941 = vmatpush1.msra.mxu0 0.0
      %942 = vmatprep.subr.mxu0 0.0
      %943 = vmatpush1.msra.mxu0 0.0
      %944 = vmatprep.subr.mxu0 0.0
      %945 = vmatpush1.msra.mxu0 0.0
      %946 = vmatprep.subr.mxu0 0.0
      %947 = vmatpush1.msra.mxu0 0.0
      %948 = vmatprep.subr.mxu0 0.0
      %949 = vmatpush1.msra.mxu0 0.0
      %950 = vmatprep.subr.mxu0 0.0
      %951 = vmatpush1.msra.mxu0 0.0
      %952 = vmatprep.subr.mxu0 0.0
      %953 = vmatpush1.msra.mxu0 0.0
      %954 = vmatprep.subr.mxu0 0.0
      %955 = vmatpush1.msra.mxu0 0.0
      %956 = vmatprep.subr.mxu0 0.0
      %957 = vmatpush1.msra.mxu0 0.0
      %958 = vmatprep.mubr.f32.mxu0 0.0
      %959 = vmatmul.mubr.f32.gmra.mrb[0].mxu0 %v892
      %v960 = vpop.f32.mrb[0].mxu0
      %v961 = vadd.f32 0.0, %v960
      %v962 = vpop.f32.mrb[0].mxu0
      %963 = vdwg.mxu0
      %v964 = vld [vmem:[%s5] sm:$0xff]
      %v965 = vld [vmem:[%s5 + $0x8] sm:$0xff]
      %v966 = vld [vmem:[%s5 + $0x10] sm:$0xff]
      %v967 = vld [vmem:[%s5 + $0x18] sm:$0xff]
      %v968 = vld [vmem:[%s5 + $0x20] sm:$0xff]
      %v969 = vld [vmem:[%s5 + $0x28] sm:$0xff]
      %v970 = vld [vmem:[%s5 + $0x30] sm:$0xff]
      %v971 = vld [vmem:[%s5 + $0x38] sm:$0xff]
      %v972 = vld [vmem:[%s5 + $0x40] sm:$0xff]
      %v973 = vld [vmem:[%s5 + $0x48] sm:$0xff]
      %v974 = vld [vmem:[%s5 + $0x50] sm:$0xff]
      %v975 = vld [vmem:[%s5 + $0x58] sm:$0xff]
      %v976 = vld [vmem:[%s5 + $0x60] sm:$0xff]
      %v977 = vld [vmem:[%s5 + $0x68] sm:$0xff]
      %v978 = vld [vmem:[%s5 + $0x70] sm:$0xff]
      %v979 = vld [vmem:[%s5 + $0x78] sm:$0xff]
      %v980 = vld [vmem:[%s6] sm:$0x1]
      %v982 = vlaneseq
      %v983 = vshrl.u32 %v982, 7
      %v984 = vsub.s32 0, %v983
      %v985 = vrot.slane %v980, %v984
      %987 = vmatprep.subr.mxu0 0.0
      %988 = vmatpush1.msra.mxu0 %v964
      %989 = vmatprep.subr.mxu0 0.0
      %990 = vmatpush1.msra.mxu0 %v965
      %991 = vmatprep.subr.mxu0 0.0
      %992 = vmatpush1.msra.mxu0 %v966
      %993 = vmatprep.subr.mxu0 0.0
      %994 = vmatpush1.msra.mxu0 %v967
      %995 = vmatprep.subr.mxu0 0.0
      %996 = vmatpush1.msra.mxu0 %v968
      %997 = vmatprep.subr.mxu0 0.0
      %998 = vmatpush1.msra.mxu0 %v969
      %999 = vmatprep.subr.mxu0 0.0
      %1000 = vmatpush1.msra.mxu0 %v970
      %1001 = vmatprep.subr.mxu0 0.0
      %1002 = vmatpush1.msra.mxu0 %v971
      %1003 = vmatprep.subr.mxu0 0.0
      %1004 = vmatpush1.msra.mxu0 %v972
      %1005 = vmatprep.subr.mxu0 0.0
      %1006 = vmatpush1.msra.mxu0 %v973
      %1007 = vmatprep.subr.mxu0 0.0
      %1008 = vmatpush1.msra.mxu0 %v974
      %1009 = vmatprep.subr.mxu0 0.0
      %1010 = vmatpush1.msra.mxu0 %v975
      %1011 = vmatprep.subr.mxu0 0.0
      %1012 = vmatpush1.msra.mxu0 %v976
      %1013 = vmatprep.subr.mxu0 0.0
      %1014 = vmatpush1.msra.mxu0 %v977
      %1015 = vmatprep.subr.mxu0 0.0
      %1016 = vmatpush1.msra.mxu0 %v978
      %1017 = vmatprep.subr.mxu0 0.0
      %1018 = vmatpush1.msra.mxu0 %v979
      %1019 = vmatprep.subr.mxu0 0.0
      %1020 = vmatpush1.msra.mxu0 0.0
      %1021 = vmatprep.subr.mxu0 0.0
      %1022 = vmatpush1.msra.mxu0 0.0
      %1023 = vmatprep.subr.mxu0 0.0
      %1024 = vmatpush1.msra.mxu0 0.0
      %1025 = vmatprep.subr.mxu0 0.0
      %1026 = vmatpush1.msra.mxu0 0.0
      %1027 = vmatprep.subr.mxu0 0.0
      %1028 = vmatpush1.msra.mxu0 0.0
      %1029 = vmatprep.subr.mxu0 0.0
      %1030 = vmatpush1.msra.mxu0 0.0
      %1031 = vmatprep.subr.mxu0 0.0
      %1032 = vmatpush1.msra.mxu0 0.0
      %1033 = vmatprep.subr.mxu0 0.0
      %1034 = vmatpush1.msra.mxu0 0.0
      %1035 = vmatprep.subr.mxu0 0.0
      %1036 = vmatpush1.msra.mxu0 0.0
      %1037 = vmatprep.subr.mxu0 0.0
      %1038 = vmatpush1.msra.mxu0 0.0
      %1039 = vmatprep.subr.mxu0 0.0
      %1040 = vmatpush1.msra.mxu0 0.0
      %1041 = vmatprep.subr.mxu0 0.0
      %1042 = vmatpush1.msra.mxu0 0.0
      %1043 = vmatprep.subr.mxu0 0.0
      %1044 = vmatpush1.msra.mxu0 0.0
      %1045 = vmatprep.subr.mxu0 0.0
      %1046 = vmatpush1.msra.mxu0 0.0
      %1047 = vmatprep.subr.mxu0 0.0
      %1048 = vmatpush1.msra.mxu0 0.0
      %1049 = vmatprep.subr.mxu0 0.0
      %1050 = vmatpush1.msra.mxu0 0.0
      %1051 = vmatprep.mubr.f32.mxu0 0.0
      %1052 = vmatmul.mubr.f32.gmra.mrb[0].mxu0 %v961
      %v1053 = vpop.f32.mrb[0].mxu0
      %v1054 = vadd.f32 %v985, %v1053
      %v1055 = vpop.f32.mrb[0].mxu0
      %1056 = vdwg.mxu0
      %1057 = vst [vmem:[%s317] sm:$0xff] %v1054
      %p1058 = scmp.lt.s32.totalorder %s18, 1
      %s1059 = scalar_select %p1058, %s18, 1
      %s1060 = smul.addr %s1059, 8
      %s1061 = scalar_lea.vmem %s7, %s1060
      // Predicated region
      $region49: #{gcn_forward.1} parent=47 // pred_check
        %p1062 = pneg %p198
      $region50: #{gcn_forward.1} parent=47 // pred_check_branch
        %1064 = sbr.rel (%p1062) target = $region52
      $region51: #{gcn_forward.1} parent=47 // pred_region
        _
      $region52: #{gcn_forward.1} parent=47 // pred_fallthru
        _
    $region48: #{gcn_forward.1} parent=5 // pred_fallthru
      _
    %p1065 = scmp.le.s32.totalorder 2, %s13
    // Predicated region
    $region53: #{gcn_forward.1} parent=5 // pred_check
      %p1066 = pneg %p1065
    $region54: #{gcn_forward.1} parent=5 // pred_check_branch
      %1068 = sbr.rel (%p1066) target = $region56
    $region55: #{gcn_forward.1} parent=5 // pred_region
      %s1069 = ssub.s32 %s13, 2
      // Predicated region
      $region57: #{gcn_forward.1} parent=55 // pred_check
        %p1070 = pneg %p204
      $region58: #{gcn_forward.1} parent=55 // pred_check_branch
        %1072 = sbr.rel (%p1070) target = $region60
      $region59: #{gcn_forward.1} parent=55 // pred_region
        %p1073 = scmp.lt.s32.totalorder %s19, 1
        %s1074 = scalar_select %p1073, %s19, 1
        %s1075 = smul.addr %s1074, 8
        %s1076 = scalar_lea.vmem %s7, %s1075
      $region60: #{gcn_forward.1} parent=55 // pred_fallthru
        _
    $region56: #{gcn_forward.1} parent=5 // pred_fallthru
      _
  $region6: #{gcn_forward.1} parent=0 // loop_footer
    %s17 = sadd.s32 1, %s13
  $region7: #{gcn_forward.1} parent=0 // loop_footer_branch
    %12 = sbr.rel target = $region3
  $region8: #{gcn_forward.1} parent=0 // loop_exit
    _

</llo_original>
